<compile_context>
chip_gen: v5e
topology: v5e:2x2
jax: 0.10.0
libtpu: 0.0.40
codegen_flags: <defaults>
</compile_context>

<pallas_src>
import jax
import jax.numpy as jnp
from jax.experimental import pallas as pl
from jax.experimental.pallas import tpu as pltpu


def resblock_kernel(w_ref, b_ref, x_ref, o_ref):
    # w_ref, b_ref: (1, 1) f32 scalars in SMEM
    # x_ref, o_ref: (block_rows, lanes) VMEM tiles
    w = w_ref[0, 0]
    b = b_ref[0, 0]
    xf = x_ref[...].astype(jnp.float32)
    # conv1x1 (scalar mul + bias) -> ReLU -> residual add, all on the VPU
    o_ref[...] = (xf + jnp.maximum(xf * w + b, 0.0)).astype(o_ref.dtype)


def _round_up(x, m):
    return ((x + m - 1) // m) * m


def _block_bytes_target():
    """Per-block byte target, generation-aware (bigger blocks only where VMEM allows)."""
    try:
        kind = jax.devices()[0].device_kind.lower()
    except Exception:
        kind = ""
    if "v7" in kind or "7x" in kind:
        return 4 << 20   # 4 MiB blocks -> 16 MiB double-buffered in+out (< 32 MiB default)
    return 2 << 20       # 2 MiB blocks -> 8 MiB double-buffered (fine on v5e's 16 MiB)


def resblock_forward(x_nchw, weight, bias):
    """x_nchw: (N, 1, H, W). weight: conv weight (1,1,1,1). bias: (1,)."""
    N, C, H, W = x_nchw.shape
    assert C == 1, "ResBlock's Conv2d(1, 1, ...) requires a single input channel"
    orig_shape = x_nchw.shape
    dtype = x_nchw.dtype
    itemsize = jnp.dtype(dtype).itemsize
    sub = max(8, 32 // itemsize)          # sublane multiple: 8 (f32), 16 (bf16), 32 (i8)

    total = N * C * H * W
    x_flat = x_nchw.reshape(-1)

    # Lane-dense width: largest multiple of 128 (<= 1024) that divides total -> no pad,
    # no post-kernel slice, full-width unmasked vector stores.
    lanes = None
    for cand in (1024, 512, 256, 128):
        if total % cand == 0:
            lanes = cand
            break
    if lanes is None:
        # Unavoidable pad (total not a multiple of 128): pad only to a lane multiple,
        # never to a block multiple (Pallas masks the ragged last block).
        lanes = 1024
        padded_total = _round_up(total, lanes)
        x_flat = jnp.pad(x_flat, (0, padded_total - total))
    else:
        padded_total = total

    rows = padded_total // lanes
    x2d = x_flat.reshape(rows, lanes)

    # Block rows: multiple of `sub`, capped by VMEM-friendly block bytes, and small
    # enough that the grid has >= 2 steps (so v7x megacore sharding kicks in).
    max_block_rows = max(sub, (_block_bytes_target() // (lanes * itemsize)) // sub * sub)
    if rows <= sub:
        block_rows = rows                 # full-dim block (allowed even if < sublane tile)
    else:
        block_rows = min(max_block_rows, _round_up(pl.cdiv(rows, 2), sub))
    grid = (pl.cdiv(rows, block_rows),)

    w_scalar = jnp.asarray(weight, jnp.float32).reshape(1, 1)
    b_scalar = jnp.asarray(bias, jnp.float32).reshape(1, 1)

    out2d = pl.pallas_call(
        resblock_kernel,
        out_shape=jax.ShapeDtypeStruct((rows, lanes), dtype),
        grid=grid,
        in_specs=[
            pl.BlockSpec(memory_space=pltpu.SMEM),             # w (scalar)
            pl.BlockSpec(memory_space=pltpu.SMEM),             # b (scalar)
            pl.BlockSpec((block_rows, lanes), lambda i: (i, 0)),
        ],
        out_specs=pl.BlockSpec((block_rows, lanes), lambda i: (i, 0)),
        input_output_aliases={2: 0},                            # write over the x slab
        cost_estimate=pl.CostEstimate(
            flops=4 * padded_total,
            bytes_accessed=2 * padded_total * itemsize,
            transcendentals=0),
        compiler_params=pltpu.CompilerParams(
            dimension_semantics=("parallel",)),
    )(w_scalar, b_scalar, x2d)

    out = out2d.reshape(-1)
    if padded_total != total:
        out = out[:total]
    return out.reshape(orig_shape)


if __name__ == "__main__":
    key = jax.random.PRNGKey(0)
    k_x, k_w, k_b = jax.random.split(key, 3)

    # Small shapes consistent with the module: NCHW with C=1 (Conv2d(1, 1, ...))
    N, C, H, W = 2, 1, 16, 16
    x = jax.random.normal(k_x, (N, C, H, W), dtype=jnp.float32)

    # Deterministic synthetic parameters matching Conv2d(1, 1, kernel_size=1) shapes
    conv_weight = jax.random.normal(k_w, (1, 1, 1, 1), dtype=jnp.float32)
    conv_bias = jax.random.normal(k_b, (1,), dtype=jnp.float32)

    # Reference (computed before the kernel call; kernel may alias/donate its input slab)
    ref = x + jnp.maximum(x * conv_weight.reshape(()) + conv_bias.reshape(()), 0.0)

    out = resblock_forward(x, conv_weight, conv_bias)
    out = jax.block_until_ready(out)

    assert out.shape == x.shape
    assert jnp.allclose(out, ref, atol=1e-6), "mismatch vs reference"

    print("KERNEL_OK")
</pallas_src>

<mosaic_0001>
module attributes {stable_mosaic.version = 11 : i64} {
  func.func @resblock_kernel(%arg0: i32, %arg1: memref<1x1xf32, #tpu.memory_space<smem>>, %arg2: memref<1x1xf32, #tpu.memory_space<smem>>, %arg3: memref<1x512xf32, #tpu.memory_space<vmem>>, %arg4: memref<1x512xf32, #tpu.memory_space<vmem>>) attributes {dimension_semantics = [#tpu.dimension_semantics<parallel>], iteration_bounds = array<i64: 1>, scalar_prefetch = 0 : i64, scratch_operands = 0 : i64, tpu.core_type = #tpu.core_type<tc>, window_params = [{transform_indices = @transform_0, window_bounds = array<i64: 1, 1>}, {transform_indices = @transform_1, window_bounds = array<i64: 1, 1>}, {transform_indices = @transform_2, window_bounds = array<i64: 1, 512>}, {transform_indices = @transform_3, window_bounds = array<i64: 1, 512>}]} {
    %c0 = arith.constant 0 : index
    %c0_0 = arith.constant 0 : index
    %0 = memref.load %arg1[%c0, %c0_0] : memref<1x1xf32, #tpu.memory_space<smem>>
    %c0_1 = arith.constant 0 : index
    %c0_2 = arith.constant 0 : index
    %1 = memref.load %arg2[%c0_1, %c0_2] : memref<1x1xf32, #tpu.memory_space<smem>>
    %c0_3 = arith.constant 0 : index
    %c0_4 = arith.constant 0 : index
    %2 = vector.load %arg3[%c0_3, %c0_4] : memref<1x512xf32, #tpu.memory_space<vmem>>, vector<1x512xf32>
    %3 = vector.broadcast %0 : f32 to vector<1x512xf32>
    %4 = arith.mulf %2, %3 : vector<1x512xf32>
    %5 = vector.broadcast %1 : f32 to vector<1x512xf32>
    %6 = arith.addf %4, %5 : vector<1x512xf32>
    %cst = arith.constant 0.000000e+00 : f32
    %7 = vector.broadcast %cst : f32 to vector<1x512xf32>
    %8 = arith.maximumf %6, %7 : vector<1x512xf32>
    %9 = arith.addf %2, %8 : vector<1x512xf32>
    %c0_5 = arith.constant 0 : index
    %c0_6 = arith.constant 0 : index
    %10 = vector.load %arg4[%c0_5, %c0_6] : memref<1x512xf32, #tpu.memory_space<vmem>>, vector<1x512xf32>
    tpu.vector_store %arg4[%c0_5, %c0_6], %9 {strides = array<i32>} : memref<1x512xf32, #tpu.memory_space<vmem>>, vector<1x512xf32>,
    return
  }
  func.func @transform_0(%arg0: i32) -> (i32, i32) {
    %c0_i32 = arith.constant 0 : i32
    %c0_i32_0 = arith.constant 0 : i32
    %c0_i32_1 = arith.constant 0 : i32
    return %c0_i32, %c0_i32_0 : i32, i32
  }
  func.func @transform_1(%arg0: i32) -> (i32, i32) {
    %c0_i32 = arith.constant 0 : i32
    %c0_i32_0 = arith.constant 0 : i32
    %c0_i32_1 = arith.constant 0 : i32
    return %c0_i32, %c0_i32_0 : i32, i32
  }
  func.func @transform_2(%arg0: i32) -> (i32, i32) {
    %c0_i32 = arith.constant 0 : i32
    %c0_i32_0 = arith.constant 0 : i32
    return %arg0, %c0_i32 : i32, i32
  }
  func.func @transform_3(%arg0: i32) -> (i32, i32) {
    %c0_i32 = arith.constant 0 : i32
    %c0_i32_0 = arith.constant 0 : i32
    return %arg0, %c0_i32 : i32, i32
  }
}

</mosaic_0001>

<llo_original>
// kernel: tpu_custom_call.1
$region0: #{tpu_custom_call.1}
  #allocation0 [shape = 'u32[]', space=smem, size = 0x4, offset = 0x4, fixed_abs, tag = 'smem constant byte address 0x4 - core index']
  #allocation1 [shape = 'u32[72,128]{1,0:T(1,128)}', space=vmem, size = 0x9000, scoped, tag = 'internal scratch']
  #allocation2 [shape = 'f32[1,1]{1,0:T(1,128)S(6)}', space=smem, size = 0x200, scoped, tag = 'scoped memory for tpu_custom_call.1']
  #allocation3 [shape = 'f32[1,1]{1,0:T(1,128)S(6)}', space=smem, size = 0x200, scoped, tag = 'scoped memory for tpu_custom_call.1']
  %s0 = inlined_call_operand.<no memory space> [shape: f32[1,1], index: 0, kind: input, shape index: {}]
  %s1 = inlined_call_operand.<no memory space> [shape: f32[1,1], index: 1, kind: input, shape index: {}]
  %s2 = inlined_call_operand.hbm [shape: f32[1,512], index: 2, kind: input, shape index: {}, may-alias: {2,3}]
  %s3 = inlined_call_operand.hbm [shape: f32[1,512], index: 3, kind: output, shape index: {}, may-alias: {2,3}]
  %s4 = sld [smem:[#allocation0]]
  $region26: #{tpu_custom_call.1} parent=0
    _
  %s6 = ssub.s32 1, %s4
  %s7 = scalar_select 0, %s6, %s4
  %8 = sst [smem:[#allocation2]] %s0
  %9 = sst [smem:[#allocation3]] %s1
  $region1: #{tpu_custom_call.1} parent=0
    #allocation4 [shape = 'u8[2048]{0}', space=vmem, size = 0x800, scoped, tag = 'input window, operand 2, single buffered']
    #allocation5 [shape = 's32[1]{0}', space=sflag, size = 0x4, scoped, tag = 'scoped memory for tpu_custom_call.1']
    #allocation6 [shape = 's32[1]{0}', space=sflag, size = 0x4, scoped, tag = 'scoped memory for tpu_custom_call.1']
    #allocation7 [shape = 'u8[2048]{0}', space=vmem, size = 0x800, scoped, tag = 'output window, operand 0, single buffered']
    %10 = vsyncpa [#allocation5], 0
    %11 = vsyncpa [#allocation6], 0
    // Predicated region
    $region2: #{tpu_custom_call.1} parent=1 // pred_check
      _
    $region3: #{tpu_custom_call.1} parent=1 // pred_check_branch
      %13 = sbr.rel (0) target = $region5
    $region4: #{tpu_custom_call.1} parent=1 // pred_region
      _
    $region5: #{tpu_custom_call.1} parent=1 // pred_fallthru
      _
    // Predicated region
    $region6: #{tpu_custom_call.1} parent=1 // pred_check
      _
    $region7: #{tpu_custom_call.1} parent=1 // pred_check_branch
      %15 = sbr.rel (0) target = $region9
    $region8: #{tpu_custom_call.1} parent=1 // pred_region
      _
    $region9: #{tpu_custom_call.1} parent=1 // pred_fallthru
      _
    // Predicated region
    $region10: #{tpu_custom_call.1} parent=1 // pred_check
      _
    $region11: #{tpu_custom_call.1} parent=1 // pred_check_branch
      %17 = sbr.rel (0) target = $region13
    $region12: #{tpu_custom_call.1} parent=1 // pred_region
      %19 = vsyncadd [#allocation5], 0
      %s21 = sshll.u32 %s2, 4
      %s22 = int_to_ptr.hbm [resolvable:$true] %s21
      %s23 = sshll.u32 [#allocation4], 4
      %s24 = int_to_ptr.vmem [resolvable:$true] %s23
      %26 = dma.hbm_to_vmem [thread:$0]  %s22, 64, %s24, [#allocation5]
    $region13: #{tpu_custom_call.1} parent=1 // pred_fallthru
      _
    // Predicated region
    $region14: #{tpu_custom_call.1} parent=1 // pred_check
      _
    $region15: #{tpu_custom_call.1} parent=1 // pred_check_branch
      %28 = sbr.rel (0) target = $region17
    $region16: #{tpu_custom_call.1} parent=1 // pred_region
      %30 = dma.done [#allocation5], 64
    $region17: #{tpu_custom_call.1} parent=1 // pred_fallthru
      _
    %s31 = sld [smem:[#allocation2]]
    %s32 = sld [smem:[#allocation3]]
    %v33 = vld [vmem:[#allocation4] sm:$0xf]
    %v34 = vstv %s31
    %v35 = vmul.f32 %v33, %v34
    %v36 = vstv %s32
    %v37 = vadd.f32 %v35, %v36
    %v38 = vmax.f32 %v37, 0.0
    %v39 = vadd.f32 %v33, %v38
    %v40 = vlaneseq
    %vm41 = vcmp.ge.s32.totalorder %v40, 0
    %vm42 = vcmp.lt.s32.totalorder %v40, 512
    %vm43 = vmand %vm41, %vm42
    %44 = vst.msk [vmem:[#allocation7] sm:$0xf] %vm43, %v39
    // Predicated region
    $region18: #{tpu_custom_call.1} parent=1 // pred_check
      _
    $region19: #{tpu_custom_call.1} parent=1 // pred_check_branch
      %46 = sbr.rel (0) target = $region21
    $region20: #{tpu_custom_call.1} parent=1 // pred_region
      %48 = vsyncadd [#allocation6], 0
      %s50 = sshll.u32 [#allocation7], 4
      %s51 = int_to_ptr.vmem [resolvable:$true] %s50
      %s52 = sshll.u32 %s3, 4
      %s53 = int_to_ptr.hbm [resolvable:$true] %s52
      %55 = dma.vmem_to_hbm [thread:$0]  %s51, 64, %s53, [#allocation6]
    $region21: #{tpu_custom_call.1} parent=1 // pred_fallthru
      _
    // Predicated region
    $region22: #{tpu_custom_call.1} parent=1 // pred_check
      _
    $region23: #{tpu_custom_call.1} parent=1 // pred_check_branch
      %57 = sbr.rel (0) target = $region25
    $region24: #{tpu_custom_call.1} parent=1 // pred_region
      %59 = dma.done [#allocation6], 64
    $region25: #{tpu_custom_call.1} parent=1 // pred_fallthru
      _
    %60 = vsyncpa [#allocation5], 1
    %61 = vsyncpa [#allocation6], 1

</llo_original>
